<compile_context>
chip_gen: v6e
topology: v6e:2x2x1
jax: 0.10.0
libtpu: 0.0.40
codegen_flags: <defaults>
</compile_context>

<pallas_src>
import functools

import jax
import jax.numpy as jnp
import numpy as np
from jax import lax
from jax.experimental import pallas as pl
from jax.experimental.pallas import tpu as pltpu

VALID_MODE = ["binary", "multiclass", "multilabel"]

# Double-buffered working-set target; fits under the default scoped-VMEM limit on
# v5e (16 MiB), v6e (32 MiB) and v7x (32 MiB of 64 MiB physical).
_VMEM_BUDGET = 8 * 1024 * 1024


def _choose_row_tile(B, C, bytes_per_row):
    """Rows per block: big enough to pipeline, small enough for 2x-buffered VMEM."""
    tb = _VMEM_BUDGET // max(2 * bytes_per_row, 1)
    tb = min(1024, max(32, (tb // 32) * 32))  # multiple of 32 (int8 sublane packing)
    return B if B <= tb else tb


def _choose_lane_tile(B):
    """Lanes per block for the transposed (1, B) binary layout."""
    tl = min(2048, ((_VMEM_BUDGET // (2 * 13)) // 128) * 128)
    return B if B <= tl else tl


# ----------------------------- kernels ---------------------------------------


def _multilabel_kernel(x_ref, y_ref, loss_ref, prob_ref, pred_ref, *, total_b):
    x = x_ref[...]                               # (TB, C) f32 logits
    y = y_ref[...]                               # (TB, C) f32 multi-hot
    tb, c = x.shape
    # Shared EUP term: e = exp(-|x|) (used by both BCE and sigmoid).
    e = jnp.exp(-jnp.abs(x))
    # Stable BCE-with-logits (torch.nn.BCEWithLogitsLoss, elementwise, pre-mean).
    per = jnp.maximum(x, 0.0) - x * y + jnp.log1p(e)
    # Mask rows belonging to grid padding (partial last block).
    rows = lax.broadcasted_iota(jnp.int32, (tb, c), 0) + pl.program_id(0) * tb
    per = jnp.where(rows < total_b, per, 0.0)
    loss_ref[...] = jnp.sum(jnp.sum(per, axis=1, keepdims=True), axis=0, keepdims=True)
    # sigmoid(x) = where(x>=0, 1/(1+e), e/(1+e)); reciprocal on the EUP slot.
    inv = pl.reciprocal(1.0 + e, approx=True)
    prob_ref[...] = jnp.where(x >= 0.0, inv, e * inv)
    # sigmoid(x) > 0.5  <=>  x > 0  (no dependency on the EUP result).
    pred_ref[...] = jnp.where(x > 0.0, 1, 0).astype(jnp.int8)


def _binary_kernel(z_ref, y_ref, loss_ref, prob_ref, pred_ref, *, total_b):
    z = z_ref[...]                               # (1, TL) f32 = logits[:, 0], lane-dense
    y = y_ref[...]                               # (1, TL) f32
    tl = z.shape[1]
    e = jnp.exp(-jnp.abs(z))
    per = jnp.maximum(z, 0.0) - z * y + jnp.log1p(e)
    cols = lax.broadcasted_iota(jnp.int32, (1, tl), 1) + pl.program_id(0) * tl
    per = jnp.where(cols < total_b, per, 0.0)
    loss_ref[...] = jnp.sum(per, axis=1, keepdims=True)
    inv = pl.reciprocal(1.0 + e, approx=True)
    prob_ref[...] = jnp.where(z >= 0.0, inv, e * inv)
    pred_ref[...] = jnp.where(z > 0.0, 1, 0).astype(jnp.int8)


def _multiclass_kernel(x_ref, y_ref, loss_ref, prob_ref, pred_ref, *, total_b):
    x = x_ref[...]                               # (TB, C) f32 logits
    y = y_ref[...]                               # (TB, 1) int32 class ids
    tb, c = x.shape
    m = jnp.max(x, axis=-1, keepdims=True)
    e = jnp.exp(x - m)
    s = jnp.sum(e, axis=-1, keepdims=True)
    prob_ref[...] = e * pl.reciprocal(s, approx=True)     # softmax (EUP reciprocal)
    logsumexp = m + jnp.log(s)                             # exact form for the loss
    col = lax.broadcasted_iota(jnp.int32, (tb, c), 1)
    # True-class logit via select + row reduce (no one-hot multiply).
    true_logit = jnp.sum(jnp.where(col == y, x, 0.0), axis=-1, keepdims=True)
    per = logsumexp - true_logit                           # per-sample cross-entropy
    rows = lax.broadcasted_iota(jnp.int32, (tb, 1), 0) + pl.program_id(0) * tb
    per = jnp.where(rows < total_b, per, 0.0)
    loss_ref[...] = jnp.sum(per, axis=0, keepdims=True)
    # argmax along classes (ties -> lowest index).
    pred_ref[...] = jnp.min(jnp.where(x == m, col, c), axis=-1,
                            keepdims=True).astype(jnp.int32)


# ----------------------------- pallas_call wrappers ---------------------------


_COMPILER_PARAMS = pltpu.CompilerParams(dimension_semantics=("parallel",))


def _call_rowwise(kernel, logits, y, pred_dtype, pred_cols, tb):
    B, C = logits.shape
    yc = y.shape[1]
    n_blocks = pl.cdiv(B, tb)
    out_shape = (
        jax.ShapeDtypeStruct((n_blocks, 1, 1), jnp.float32),   # per-block loss sums
        jax.ShapeDtypeStruct((B, C), jnp.float32),             # y_prob
        jax.ShapeDtypeStruct((B, pred_cols), pred_dtype),      # y_pred
    )
    return pl.pallas_call(
        functools.partial(kernel, total_b=B),
        out_shape=out_shape,
        grid=(n_blocks,),
        in_specs=[
            pl.BlockSpec((tb, C), lambda i: (i, 0)),
            pl.BlockSpec((tb, yc), lambda i: (i, 0)),
        ],
        out_specs=(
            pl.BlockSpec((None, 1, 1), lambda i: (i, 0, 0)),
            pl.BlockSpec((tb, C), lambda i: (i, 0)),
            pl.BlockSpec((tb, pred_cols), lambda i: (i, 0)),
        ),
        compiler_params=_COMPILER_PARAMS,
    )(logits, y)


def _call_binary(z_row, y_row, tl):
    B = z_row.shape[1]
    n_blocks = pl.cdiv(B, tl)
    out_shape = (
        jax.ShapeDtypeStruct((n_blocks, 1, 1), jnp.float32),   # per-block loss sums
        jax.ShapeDtypeStruct((1, B), jnp.float32),             # y_prob (lane-dense)
        jax.ShapeDtypeStruct((1, B), jnp.int8),                # y_pred (lane-dense)
    )
    return pl.pallas_call(
        functools.partial(_binary_kernel, total_b=B),
        out_shape=out_shape,
        grid=(n_blocks,),
        in_specs=[
            pl.BlockSpec((1, tl), lambda i: (0, i)),
            pl.BlockSpec((1, tl), lambda i: (0, i)),
        ],
        out_specs=(
            pl.BlockSpec((None, 1, 1), lambda i: (i, 0, 0)),
            pl.BlockSpec((1, tl), lambda i: (0, i)),
            pl.BlockSpec((1, tl), lambda i: (0, i)),
        ),
        compiler_params=_COMPILER_PARAMS,
    )(z_row, y_row)


# ----------------------------- model wrapper ----------------------------------


class PallasBaseModel:
    """JAX/Pallas port of pyhealth BaseModel's cal_loss_and_output hot path."""

    def __init__(self, num_classes: int, mode: str):
        assert mode in VALID_MODE, f"mode must be one of {VALID_MODE}"
        self.num_classes = num_classes
        self.mode = mode

    def cal_loss_and_output(self, logits, target):
        B, C = logits.shape
        logits = logits.astype(jnp.float32)
        if self.mode == "multilabel":
            # target: multi-hot (B, C) float32 (pre-encoded; tokenizer not translatable)
            y = target.astype(jnp.float32)
            tb = _choose_row_tile(B, C, bytes_per_row=13 * C)  # 4+4+4+1 bytes/elem
            loss_parts, y_prob, y_pred = _call_rowwise(
                _multilabel_kernel, logits, y, jnp.int8, C, tb)
            loss = jnp.sum(loss_parts) / (B * C)               # mean, torch default
            return loss, y, y_prob, y_pred
        elif self.mode == "binary":
            # target: (B,) float32 of {0, 1}
            y = target.astype(jnp.float32)
            # Only column 0 is consumed -> slice before the kernel, lay out lane-dense.
            z_row = logits[:, 0].reshape(1, B)
            y_row = y.reshape(1, B)
            tl = _choose_lane_tile(B)
            loss_parts, prob, pred = _call_binary(z_row, y_row, tl)
            loss = jnp.sum(loss_parts) / B
            return loss, y, prob[0], pred[0]
        elif self.mode == "multiclass":
            # target: (B,) int32 class indices
            y = target.astype(jnp.int32)
            tb = _choose_row_tile(B, C, bytes_per_row=8 * C + 8)
            loss_parts, y_prob, y_pred = _call_rowwise(
                _multiclass_kernel, logits, y.reshape(B, 1), jnp.int32, 1, tb)
            loss = jnp.sum(loss_parts) / B
            return loss, y, y_prob, y_pred[:, 0]
        else:
            raise ValueError(f"Invalid mode: {self.mode}")


# ----------------------------- main --------------------------------------------

if __name__ == "__main__":
    key = jax.random.PRNGKey(0)
    B, C = 8, 32
    k1, k2, k3, k4 = jax.random.split(key, 4)
    logits = jax.random.normal(k1, (B, C), dtype=jnp.float32)

    # multilabel
    y_ml = (jax.random.uniform(k2, (B, C)) > 0.7).astype(jnp.float32)
    loss_ml, _, prob_ml, pred_ml = PallasBaseModel(C, "multilabel").cal_loss_and_output(logits, y_ml)

    # binary
    y_bin = (jax.random.uniform(k3, (B,)) > 0.5).astype(jnp.float32)
    loss_b, _, prob_b, pred_b = PallasBaseModel(C, "binary").cal_loss_and_output(logits, y_bin)

    # multiclass
    y_mc = jax.random.randint(k4, (B,), 0, C, dtype=jnp.int32)
    loss_m, _, prob_m, pred_m = PallasBaseModel(C, "multiclass").cal_loss_and_output(logits, y_mc)

    jax.block_until_ready((loss_ml, prob_ml, pred_ml,
                           loss_b, prob_b, pred_b,
                           loss_m, prob_m, pred_m))

    # quiet sanity checks against pure-JAX references
    ref_ml = jnp.mean(jnp.maximum(logits, 0) - logits * y_ml +
                      jnp.log1p(jnp.exp(-jnp.abs(logits))))
    np.testing.assert_allclose(np.asarray(loss_ml), np.asarray(ref_ml), rtol=1e-3, atol=1e-3)
    np.testing.assert_allclose(np.asarray(prob_ml), np.asarray(jax.nn.sigmoid(logits)),
                               rtol=1e-2, atol=1e-2)
    np.testing.assert_array_equal(np.asarray(pred_ml),
                                  np.asarray((logits > 0).astype(jnp.int8)))

    z = logits[:, 0]
    ref_b = jnp.mean(jnp.maximum(z, 0) - z * y_bin + jnp.log1p(jnp.exp(-jnp.abs(z))))
    np.testing.assert_allclose(np.asarray(loss_b), np.asarray(ref_b), rtol=1e-3, atol=1e-3)
    np.testing.assert_allclose(np.asarray(prob_b), np.asarray(jax.nn.sigmoid(z)),
                               rtol=1e-2, atol=1e-2)
    np.testing.assert_array_equal(np.asarray(pred_b),
                                  np.asarray((z > 0).astype(jnp.int8)))

    ref_m = jnp.mean(jax.nn.logsumexp(logits, axis=-1) - logits[jnp.arange(B), y_mc])
    np.testing.assert_allclose(np.asarray(loss_m), np.asarray(ref_m), rtol=1e-3, atol=1e-3)
    np.testing.assert_allclose(np.asarray(prob_m), np.asarray(jax.nn.softmax(logits, axis=-1)),
                               rtol=1e-2, atol=1e-2)
    np.testing.assert_array_equal(np.asarray(pred_m), np.asarray(jnp.argmax(logits, axis=-1)))

    print("KERNEL_OK")
</pallas_src>

<mosaic_0001>
module attributes {stable_mosaic.version = 11 : i64} {
  func.func @_multilabel_kernel(%arg0: i32, %arg1: memref<8x32xf32, #tpu.memory_space<vmem>>, %arg2: memref<8x32xf32, #tpu.memory_space<vmem>>, %arg3: memref<1x1x1xf32, #tpu.memory_space<vmem>>, %arg4: memref<8x32xf32, #tpu.memory_space<vmem>>, %arg5: memref<8x32xi8, #tpu.memory_space<vmem>>) attributes {dimension_semantics = [#tpu.dimension_semantics<parallel>], iteration_bounds = array<i64: 1>, scalar_prefetch = 0 : i64, scratch_operands = 0 : i64, tpu.core_type = #tpu.core_type<tc>, window_params = [{transform_indices = @transform_0, window_bounds = array<i64: 8, 32>}, {transform_indices = @transform_1, window_bounds = array<i64: 8, 32>}, {transform_indices = @transform_2, window_bounds = array<i64: 1, 1, 1>}, {transform_indices = @transform_3, window_bounds = array<i64: 8, 32>}, {transform_indices = @transform_4, window_bounds = array<i64: 8, 32>}]} {
    %c0 = arith.constant 0 : index
    %c0_0 = arith.constant 0 : index
    %0 = vector.load %arg1[%c0, %c0_0] : memref<8x32xf32, #tpu.memory_space<vmem>>, vector<8x32xf32>
    %c0_1 = arith.constant 0 : index
    %c0_2 = arith.constant 0 : index
    %1 = vector.load %arg2[%c0_1, %c0_2] : memref<8x32xf32, #tpu.memory_space<vmem>>, vector<8x32xf32>
    %2 = math.absf %0 : vector<8x32xf32>
    %cst = arith.constant 0.000000e+00 : f32
    %3 = vector.broadcast %cst : f32 to vector<8x32xf32>
    %4 = arith.subf %3, %2 : vector<8x32xf32>
    %5 = math.exp %4 : vector<8x32xf32>
    %cst_3 = arith.constant 0.000000e+00 : f32
    %6 = vector.broadcast %cst_3 : f32 to vector<8x32xf32>
    %7 = arith.maximumf %0, %6 : vector<8x32xf32>
    %8 = arith.mulf %0, %1 : vector<8x32xf32>
    %9 = arith.subf %7, %8 : vector<8x32xf32>
    %10 = math.log1p %5 : vector<8x32xf32>
    %11 = arith.addf %9, %10 : vector<8x32xf32>
    %12 = tpu.iota {dimensions = array<i32: 0>} : vector<8x32xi32>
    %c8_i32 = arith.constant 8 : i32
    %13 = arith.muli %arg0, %c8_i32 : i32
    %14 = vector.broadcast %13 : i32 to vector<8x32xi32>
    %15 = arith.addi %12, %14 : vector<8x32xi32>
    %c8_i32_4 = arith.constant 8 : i32
    %16 = vector.broadcast %c8_i32_4 : i32 to vector<8x32xi32>
    %17 = arith.cmpi slt, %15, %16 : vector<8x32xi32>
    %cst_5 = arith.constant 0.000000e+00 : f32
    %18 = vector.broadcast %cst_5 : f32 to vector<8x32xf32>
    %19 = arith.select %17, %11, %18 : vector<8x32xi1>, vector<8x32xf32>
    %cst_6 = arith.constant dense<0.000000e+00> : vector<8xf32>
    %20 = vector.multi_reduction <add>, %19, %cst_6 [1] : vector<8x32xf32> to vector<8xf32>
    %21 = vector.shape_cast %20 : vector<8xf32> to vector<8x1xf32>
    %cst_7 = arith.constant dense<0.000000e+00> : vector<1xf32>
    %22 = vector.multi_reduction <add>, %21, %cst_7 [0] : vector<8x1xf32> to vector<1xf32>
    %23 = vector.shape_cast %22 : vector<1xf32> to vector<1x1xf32>
    %c0_8 = arith.constant 0 : index
    %c0_9 = arith.constant 0 : index
    %c0_10 = arith.constant 0 : index
    %24 = vector.load %arg3[%c0_8, %c0_9, %c0_10] : memref<1x1x1xf32, #tpu.memory_space<vmem>>, vector<1x1x1xf32>
    %25 = vector.shape_cast %24 : vector<1x1x1xf32> to vector<1x1xf32>
    %26 = vector.shape_cast %23 : vector<1x1xf32> to vector<1x1x1xf32>
    tpu.vector_store %arg3[%c0_8, %c0_9, %c0_10], %26 {strides = array<i32>} : memref<1x1x1xf32, #tpu.memory_space<vmem>>, vector<1x1x1xf32>,
    %cst_11 = arith.constant 1.000000e+00 : f32
    %27 = vector.broadcast %cst_11 : f32 to vector<8x32xf32>
    %28 = arith.addf %27, %5 : vector<8x32xf32>
    %29 = tpu.reciprocal %28 {approx = true} : vector<8x32xf32> -> vector<8x32xf32>
    %cst_12 = arith.constant 0.000000e+00 : f32
    %30 = vector.broadcast %cst_12 : f32 to vector<8x32xf32>
    %31 = arith.cmpf oge, %0, %30 : vector<8x32xf32>
    %32 = arith.mulf %5, %29 : vector<8x32xf32>
    %33 = arith.select %31, %29, %32 : vector<8x32xi1>, vector<8x32xf32>
    %c0_13 = arith.constant 0 : index
    %c0_14 = arith.constant 0 : index
    %34 = vector.load %arg4[%c0_13, %c0_14] : memref<8x32xf32, #tpu.memory_space<vmem>>, vector<8x32xf32>
    tpu.vector_store %arg4[%c0_13, %c0_14], %33 {strides = array<i32>} : memref<8x32xf32, #tpu.memory_space<vmem>>, vector<8x32xf32>,
    %cst_15 = arith.constant 0.000000e+00 : f32
    %35 = vector.broadcast %cst_15 : f32 to vector<8x32xf32>
    %36 = arith.cmpf ogt, %0, %35 : vector<8x32xf32>
    %c1_i32 = arith.constant 1 : i32
    %c0_i32 = arith.constant 0 : i32
    %37 = vector.broadcast %c1_i32 : i32 to vector<8x32xi32>
    %38 = vector.broadcast %c0_i32 : i32 to vector<8x32xi32>
    %39 = arith.select %36, %37, %38 : vector<8x32xi1>, vector<8x32xi32>
    %40 = arith.trunci %39 : vector<8x32xi32> to vector<8x32xi8>
    %c0_16 = arith.constant 0 : index
    %c0_17 = arith.constant 0 : index
    %41 = vector.load %arg5[%c0_16, %c0_17] : memref<8x32xi8, #tpu.memory_space<vmem>>, vector<8x32xi8>
    tpu.vector_store %arg5[%c0_16, %c0_17], %40 {strides = array<i32>} : memref<8x32xi8, #tpu.memory_space<vmem>>, vector<8x32xi8>,
    return
  }
  func.func @transform_0(%arg0: i32) -> (i32, i32) {
    %c0_i32 = arith.constant 0 : i32
    %c0_i32_0 = arith.constant 0 : i32
    return %arg0, %c0_i32 : i32, i32
  }
  func.func @transform_1(%arg0: i32) -> (i32, i32) {
    %c0_i32 = arith.constant 0 : i32
    %c0_i32_0 = arith.constant 0 : i32
    return %arg0, %c0_i32 : i32, i32
  }
  func.func @transform_2(%arg0: i32) -> (i32, i32, i32) {
    %c0_i32 = arith.constant 0 : i32
    %c0_i32_0 = arith.constant 0 : i32
    %c0_i32_1 = arith.constant 0 : i32
    return %arg0, %c0_i32, %c0_i32_0 : i32, i32, i32
  }
  func.func @transform_3(%arg0: i32) -> (i32, i32) {
    %c0_i32 = arith.constant 0 : i32
    %c0_i32_0 = arith.constant 0 : i32
    return %arg0, %c0_i32 : i32, i32
  }
  func.func @transform_4(%arg0: i32) -> (i32, i32) {
    %c0_i32 = arith.constant 0 : i32
    %c0_i32_0 = arith.constant 0 : i32
    return %arg0, %c0_i32 : i32, i32
  }
}

</mosaic_0001>

<llo_original>
// kernel: tpu_custom_call.1
$region0: #{tpu_custom_call.1}
  #allocation0 [shape = 'u32[]', space=smem, size = 0x4, offset = 0x4, fixed_abs, tag = 'smem constant byte address 0x4 - core index']
  #allocation1 [shape = 'u32[144,128]{1,0:T(1,128)}', space=vmem, size = 0x12000, scoped, tag = 'internal scratch']
  %s0 = inlined_call_operand.hbm [shape: f32[8,32], index: 0, kind: input, shape index: {}]
  %s1 = inlined_call_operand.hbm [shape: f32[8,32], index: 1, kind: input, shape index: {}]
  %s2 = inlined_call_operand.hbm [shape: f32[1,1,1], index: 2, kind: output, shape index: {0}]
  %s3 = inlined_call_operand.hbm [shape: f32[8,32], index: 3, kind: output, shape index: {1}]
  %s4 = inlined_call_operand.hbm [shape: s8[8,32], index: 4, kind: output, shape index: {2}]
  %5 = xla_tuple %s2, %s3, %s4
  %s6 = sld [smem:[#allocation0]]
  $region42: #{tpu_custom_call.1} parent=0
    _
  %s8 = ssub.s32 1, %s6
  %s9 = scalar_select 0, %s8, %s6
  $region1: #{tpu_custom_call.1} parent=0
    #allocation2 [shape = 'u8[4096]{0}', space=vmem, size = 0x1000, scoped, tag = 'input window, operand 0, single buffered']
    #allocation3 [shape = 's32[1]{0}', space=sflag, size = 0x4, scoped, tag = 'scoped memory for tpu_custom_call.1']
    #allocation4 [shape = 's32[1]{0}', space=sflag, size = 0x4, scoped, tag = 'scoped memory for tpu_custom_call.1']
    #allocation5 [shape = 'u8[4096]{0}', space=vmem, size = 0x1000, scoped, tag = 'input window, operand 1, single buffered']
    #allocation6 [shape = 's32[1]{0}', space=sflag, size = 0x4, scoped, tag = 'scoped memory for tpu_custom_call.1']
    #allocation7 [shape = 'u8[512]{0}', space=vmem, size = 0x400, scoped, tag = 'output window, operand 0, single buffered']
    #allocation8 [shape = 'u8[4096]{0}', space=vmem, size = 0x1000, scoped, tag = 'output window, operand 1, single buffered']
    #allocation9 [shape = 's32[1]{0}', space=sflag, size = 0x4, scoped, tag = 'scoped memory for tpu_custom_call.1']
    #allocation10 [shape = 'u8[1024]{0}', space=vmem, size = 0x400, scoped, tag = 'output window, operand 2, single buffered']
    %10 = vsyncpa [#allocation3], 0
    %11 = vsyncpa [#allocation6], 0
    %12 = vsyncpa [#allocation4], 0
    %13 = vsyncpa [#allocation9], 0
    // Predicated region
    $region2: #{tpu_custom_call.1} parent=1 // pred_check
      _
    $region3: #{tpu_custom_call.1} parent=1 // pred_check_branch
      %15 = sbr.rel (0) target = $region5
    $region4: #{tpu_custom_call.1} parent=1 // pred_region
      %s17 = ssub.s32 128, 128
      %18 = vsyncadd [#allocation3], %s17
      %s20 = sshll.u32 [#allocation2], 4
      %s21 = int_to_ptr.vmem [resolvable:$true] %s20
      %23 = dma.hbm_to_vmem [thread:$0]  %s0, 128, %s21, [#allocation3]
    $region5: #{tpu_custom_call.1} parent=1 // pred_fallthru
      _
    // Predicated region
    $region6: #{tpu_custom_call.1} parent=1 // pred_check
      _
    $region7: #{tpu_custom_call.1} parent=1 // pred_check_branch
      %25 = sbr.rel (0) target = $region9
    $region8: #{tpu_custom_call.1} parent=1 // pred_region
      %s27 = ssub.s32 128, 128
      %28 = vsyncadd [#allocation6], %s27
      %s30 = sshll.u32 [#allocation5], 4
      %s31 = int_to_ptr.vmem [resolvable:$true] %s30
      %33 = dma.hbm_to_vmem [thread:$0]  %s1, 128, %s31, [#allocation6]
    $region9: #{tpu_custom_call.1} parent=1 // pred_fallthru
      _
    // Predicated region
    $region10: #{tpu_custom_call.1} parent=1 // pred_check
      _
    $region11: #{tpu_custom_call.1} parent=1 // pred_check_branch
      %35 = sbr.rel (0) target = $region13
    $region12: #{tpu_custom_call.1} parent=1 // pred_region
      %36 = dma.done [#allocation3], 128
    $region13: #{tpu_custom_call.1} parent=1 // pred_fallthru
      _
    // Predicated region
    $region14: #{tpu_custom_call.1} parent=1 // pred_check
      _
    $region15: #{tpu_custom_call.1} parent=1 // pred_check_branch
      %38 = sbr.rel (0) target = $region17
    $region16: #{tpu_custom_call.1} parent=1 // pred_region
      %39 = dma.done [#allocation6], 128
    $region17: #{tpu_custom_call.1} parent=1 // pred_fallthru
      _
    %v40 = vld [vmem:[#allocation2] sm:$0xff]
    %v41 = vld [vmem:[#allocation5] sm:$0xff]
    %v42 = vand.u32 2147483647, %v40
    %v43 = vsub.f32 0.0, %v42
    %v44 = vmul.f32 %v43, 1.442695
    %v45 = vpow.pop %v44
    %v46 = vmax.f32 %v40, 0.0
    %v47 = vmul.f32 %v40, %v41
    %v48 = vsub.f32 %v46, %v47
    %v49 = vadd.f32 %v45, 1.0
    %v50 = vlog2.pop %v49
    %v51 = vmul.f32 %v50, 0.6931472
    %v52 = vmul.f32 -0.5, %v45
    %v53 = vadd.f32 %v52, 1.0
    %v54 = vmul.f32 %v53, %v45
    %v55 = vand.u32 2147483647, %v45
    %vm56 = vcmp.lt.f32.partialorder %v55, 0.0004427343
    %v57 = vsel %vm56, %v54, %v51
    %v58 = vadd.f32 %v48, %v57
    %v59 = vlaneseq
    %v60 = vshrl.u32 %v59, 7
    %s61 = smul.u32 0, 8
    %v62 = vstv %s61
    %v63 = vadd.s32 %v60, %v62
    %vm64 = vcmp.lt.s32.totalorder %v63, 8
    %v65 = vsel %vm64, %v58, 0.0
    %vm66 = vcmask 261120
    %v67 = vsel %vm66, %v65, 0.0
    %68 = vadd.xlane.f32.xlu0 %v67
    %v69 = vpop.xlane.xlu0 %68
    %v70 = vrot.slane %v69, 4
    %v71 = vadd.f32 %v69, %v70
    %v72 = vrot.slane %v71, 2
    %v73 = vadd.f32 %v71, %v72
    %v74 = vrot.slane %v73, 1
    %v75 = vadd.f32 %v73, %v74
    %vm76 = vcmask 0
    %77 = vst.msk [vmem:[#allocation7] sm:$0x1] %vm76, %v75
    %v78 = vadd.f32 %v45, 1.0
    %v79 = vrcp.pop %v78
    %vm80 = vcmp.ge.f32.partialorder %v40, 0.0
    %v81 = vmul.f32 %v45, %v79
    %v82 = vsel %vm80, %v79, %v81
    %83 = vst.msk [vmem:[#allocation8] sm:$0xff] %vm66, %v82
    %vm84 = vcmp.gt.f32.partialorder %v40, 0.0
    %v85 = vsel %vm84, 1, 0
    %v86 = vpack.c.b16 %v85, %v85
    %v87 = vpack.c.b8 %v86, %v86
    %vm88 = vcmask 254976
    %89 = vst.msk [vmem:[#allocation10] sm:$0x3] %vm88, %v87
    // Predicated region
    $region18: #{tpu_custom_call.1} parent=1 // pred_check
      _
    $region19: #{tpu_custom_call.1} parent=1 // pred_check_branch
      %91 = sbr.rel (0) target = $region21
    $region20: #{tpu_custom_call.1} parent=1 // pred_region
      %s93 = ssub.s32 16, 16
      %94 = vsyncadd [#allocation4], %s93
      %s96 = sshll.u32 [#allocation7], 4
      %s97 = int_to_ptr.vmem [resolvable:$true] %s96
      %99 = dma.vmem_to_hbm [thread:$0]  %s97, 16, %s2, [#allocation4]
    $region21: #{tpu_custom_call.1} parent=1 // pred_fallthru
      _
    // Predicated region
    $region22: #{tpu_custom_call.1} parent=1 // pred_check
      _
    $region23: #{tpu_custom_call.1} parent=1 // pred_check_branch
      %101 = sbr.rel (0) target = $region25
    $region24: #{tpu_custom_call.1} parent=1 // pred_region
      %s103 = ssub.s32 128, 128
      %104 = vsyncadd [#allocation9], %s103
      %s106 = sshll.u32 [#allocation8], 4
      %s107 = int_to_ptr.vmem [resolvable:$true] %s106
      %109 = dma.vmem_to_hbm [thread:$0]  %s107, 128, %s3, [#allocation9]
    $region25: #{tpu_custom_call.1} parent=1 // pred_fallthru
      _
    // Predicated region
    $region26: #{tpu_custom_call.1} parent=1 // pred_check
      _
    $region27: #{tpu_custom_call.1} parent=1 // pred_check_branch
      %111 = sbr.rel (0) target = $region29
    $region28: #{tpu_custom_call.1} parent=1 // pred_region
      %s113 = ssub.s32 32, 32
      %114 = vsyncadd [#allocation9], %s113
      %s116 = sshll.u32 [#allocation10], 4
      %s117 = int_to_ptr.vmem [resolvable:$true] %s116
      %119 = dma.vmem_to_hbm [thread:$0]  %s117, 32, %s4, [#allocation9]
    $region29: #{tpu_custom_call.1} parent=1 // pred_fallthru
      _
    // Predicated region
    $region30: #{tpu_custom_call.1} parent=1 // pred_check
      _
    $region31: #{tpu_custom_call.1} parent=1 // pred_check_branch
      %121 = sbr.rel (0) target = $region33
    $region32: #{tpu_custom_call.1} parent=1 // pred_region
      %122 = dma.done [#allocation4], 16
    $region33: #{tpu_custom_call.1} parent=1 // pred_fallthru
      _
    // Predicated region
    $region34: #{tpu_custom_call.1} parent=1 // pred_check
      _
    $region35: #{tpu_custom_call.1} parent=1 // pred_check_branch
      %124 = sbr.rel (0) target = $region37
    $region36: #{tpu_custom_call.1} parent=1 // pred_region
      %125 = dma.done [#allocation9], 128
    $region37: #{tpu_custom_call.1} parent=1 // pred_fallthru
      _
    // Predicated region
    $region38: #{tpu_custom_call.1} parent=1 // pred_check
      _
    $region39: #{tpu_custom_call.1} parent=1 // pred_check_branch
      %127 = sbr.rel (0) target = $region41
    $region40: #{tpu_custom_call.1} parent=1 // pred_region
      %128 = dma.done [#allocation9], 32
    $region41: #{tpu_custom_call.1} parent=1 // pred_fallthru
      _
    %129 = vsyncpa [#allocation3], 1
    %130 = vsyncpa [#allocation6], 1
    %131 = vsyncpa [#allocation4], 1
    %132 = vsyncpa [#allocation9], 1

</llo_original>
